<compile_context>
chip_gen: v5e
topology: v5e:2x2
jax: 0.10.0
libtpu: 0.0.40
codegen_flags: <defaults>
</compile_context>

<pallas_src>
import math

import jax
import jax.numpy as jnp
import numpy as np
from jax.experimental import pallas as pl
from jax.experimental.pallas import tpu as pltpu

_N_LOGITS = 6                    # out + 5 deep-supervision heads
_N_STATS = 3 * _N_LOGITS + 1     # per logit: bce-sum, p-sum, (p*t)-sum; plus t-sum


def _fold_to_128(v):
    """Reduce the lane dim of an (n, w) f32 array (w a multiple of 128) to
    (n, 128) lane-wide partial sums using only vreg-aligned VALU adds
    (no XLU reduce, no iota/select)."""
    n, w = v.shape
    assert w % 128 == 0
    while w > 128 and w % 256 == 0:          # halving tree (fewest adds)
        h = w // 2
        v = v[:, :h] + v[:, h:]
        w = h
    if w == 128:
        return v
    acc = v[:, 0:128]                         # slab accumulation for odd*128
    for j in range(1, w // 128):
        acc = acc + v[:, j * 128:(j + 1) * 128]
    return acc


def _bcedice_kernel(t_ref, *rest):
    """Grid (n_par, num_k).  Inputs: target + 6 logits blocks, each (rows, td).

    o_ref: (_N_STATS, rows, 128) lane-wide partial sums, resident across the
    k (reduction) axis; a separate output block per parallel slice p.
    """
    *x_refs, o_ref = rest
    k = pl.program_id(1)

    @pl.when(k == 0)
    def _():
        o_ref[...] = jnp.zeros_like(o_ref)

    t = t_ref[...].astype(jnp.float32)        # (rows, td)
    o_ref[3 * _N_LOGITS] = o_ref[3 * _N_LOGITS] + _fold_to_128(t)

    for i, x_ref in enumerate(x_refs):
        x = x_ref[...].astype(jnp.float32)
        # Clipping the logit to [-100, 100] reproduces nn.BCELoss's clamp of
        # both log terms at -100 (residual differences are ~exp(-100) ~= 0).
        xc = jnp.clip(x, -100.0, 100.0)
        ax = jnp.abs(xc)
        e = jnp.exp(-ax)                      # EUP
        inv = 1.0 / (1.0 + e)
        p = jnp.where(xc >= 0.0, inv, e * inv)    # numerically stable sigmoid
        log1pe = jnp.log(1.0 + e)             # EUP: log(1 + exp(-|x|))
        # Fused stable BCE:  max(x,0) - x*t + log(1+exp(-|x|))
        bce_e = jnp.maximum(xc, 0.0) - xc * t + log1pe

        o_ref[3 * i + 0] = o_ref[3 * i + 0] + _fold_to_128(bce_e)
        o_ref[3 * i + 1] = o_ref[3 * i + 1] + _fold_to_128(p)
        o_ref[3 * i + 2] = o_ref[3 * i + 2] + _fold_to_128(p * t)


def _choose_packing(num, d):
    """Sublane packing factor G: fold the feature dim into extra rows so that
    num*G is a multiple of 8 (full f32 sublane utilization) when the feature
    dim is large enough (keep G*128 <= d so padding never exceeds real data)."""
    g = 8 // math.gcd(num, 8)                 # power of two in {1, 2, 4, 8}
    while g > 1 and g * 128 > d:
        g //= 2
    return g


def _pick_chunk(dp, rows):
    """Chunk of the packed feature dim: a multiple of 128 dividing dp, capped
    at ~1 MiB of f32 per input block and chosen so there are >= ~8 grid steps
    (DMA/compute overlap and an even split for the leading parallel axis)."""
    m = dp // 128                                     # 128-lane slabs per row
    cap_slabs = max(1, (1 << 18) // (rows * 128))     # <= ~1 MiB f32 per block
    target_slabs = max(1, m // 8)                     # >= ~8 reduction steps
    q = max(1, min(cap_slabs, target_slabs))
    best = 1
    for cand in range(q, 0, -1):
        if m % cand == 0:
            best = cand
            break
    return 128 * best


@jax.jit
def gt_bcedice_loss_new1(pre, out, target):
    """JAX/Pallas equivalent of GT_BceDiceLoss_new1.forward(pre, out, target)."""
    xs = (out,) + tuple(pre)
    assert len(xs) == _N_LOGITS
    num = target.shape[0]
    d = int(np.prod(target.shape[1:]))

    g = _choose_packing(num, d)
    rows = num * g
    d_pad = -(-d // (g * 128)) * (g * 128)            # round up to G*128
    dp = d_pad // g
    pad = d_pad - d

    def prep(a, fill):
        a2 = a.reshape(num, d)
        if pad:
            # Logits padded with a large negative (clipped to -100 in-kernel),
            # target padded with 0 -> padded elements contribute ~0 everywhere.
            a2 = jnp.pad(a2, ((0, 0), (0, pad)), constant_values=fill)
        return a2.reshape(rows, dp)

    xs2 = [prep(x, -1e4) for x in xs]
    tgt = prep(target, 0.0)

    td = _pick_chunk(dp, rows)
    chunks = dp // td
    n_par = 2 if (chunks % 2 == 0 and chunks >= 2) else 1
    num_k = chunks // n_par

    def in_map(p, k):
        return (0, p * num_k + k)

    # TODO(synk): on v7x, pltpu.CORE_PARALLEL on the leading axis could pin the
    # p-split across the two TensorCores; kept as "parallel" for portability.
    partial = pl.pallas_call(
        _bcedice_kernel,
        out_shape=jax.ShapeDtypeStruct((n_par * _N_STATS, rows, 128), jnp.float32),
        grid_spec=pltpu.PrefetchScalarGridSpec(
            num_scalar_prefetch=0,
            grid=(n_par, num_k),
            in_specs=[pl.BlockSpec((rows, td), in_map)
                      for _ in range(1 + _N_LOGITS)],
            out_specs=pl.BlockSpec((_N_STATS, rows, 128), lambda p, k: (p, 0, 0)),
        ),
        compiler_params=pltpu.CompilerParams(
            dimension_semantics=("parallel", "arbitrary"),
            vmem_limit_bytes=32 * 1024 * 1024,
        ),
    )(tgt, *xs2)

    # (n_par, n_stats, rows, 128) -> (n_stats, rows) -> unpack G -> (n_stats, num)
    stats = jnp.sum(partial.reshape(n_par, _N_STATS, rows, 128), axis=(0, 3))
    stats = jnp.sum(stats.reshape(_N_STATS, num, g), axis=-1)

    bce_sum = stats[0:3 * _N_LOGITS:3]            # (6, num)
    p_sum = stats[1:3 * _N_LOGITS:3]              # (6, num)
    inter_sum = stats[2:3 * _N_LOGITS:3]          # (6, num)
    t_sum = stats[3 * _N_LOGITS]                  # (num,)

    smooth = 1e-05
    bce = jnp.sum(bce_sum, axis=1) / (num * d)                                 # (6,)
    dice = (2.0 * inter_sum ** 2 + smooth) / (p_sum ** 2 + t_sum[None, :] ** 2 + smooth)
    dice_loss = 1.0 - jnp.sum(dice, axis=1) / num                              # (6,)
    losses = bce + dice_loss                                                   # (6,)

    # pre order is (gt_pre4, gt_pre3, gt_pre2, gt_pre1, gt_pre0)
    weights = jnp.array([0.1, 0.2, 0.3, 0.4, 0.5], dtype=jnp.float32)
    gt_loss = jnp.sum(losses[1:] * weights)
    total = losses[0] + gt_loss
    return (total, losses[1], losses[2], losses[3], losses[4], losses[5])


def _bcedice_ref(x, t):
    # pure-JAX reference of BCEDiceLoss_newversion (PyTorch semantics).
    num = t.shape[0]
    p = jax.nn.sigmoid(x).reshape(num, -1).astype(jnp.float32)
    tt = t.reshape(num, -1).astype(jnp.float32)
    bce = jnp.mean(-(tt * jnp.maximum(jnp.log(p), -100.0)
                     + (1.0 - tt) * jnp.maximum(jnp.log(1.0 - p), -100.0)))
    smooth = 1e-05
    inter = jnp.sum(p * tt, axis=1)
    dice = (2.0 * inter ** 2 + smooth) / (jnp.sum(p, axis=1) ** 2
                                          + jnp.sum(tt, axis=1) ** 2 + smooth)
    return bce + (1.0 - jnp.sum(dice) / num)


if __name__ == "__main__":
    key = jax.random.PRNGKey(0)
    N, C, H, W = 2, 1, 16, 16
    keys = jax.random.split(key, 8)

    out = jax.random.normal(keys[0], (N, C, H, W), dtype=jnp.float32)
    pre = tuple(
        jax.random.normal(keys[1 + i], (N, C, H, W), dtype=jnp.float32)
        for i in range(5)
    )
    target = jax.random.uniform(keys[7], (N, C, H, W), dtype=jnp.float32)

    result = gt_bcedice_loss_new1(pre, out, target)
    result = jax.block_until_ready(result)

    # sanity check against pure-JAX reference
    ref_out = _bcedice_ref(out, target)
    ref_pre = [_bcedice_ref(p, target) for p in pre]
    ref_total = ref_out + (ref_pre[0] * 0.1 + ref_pre[1] * 0.2 + ref_pre[2] * 0.3
                           + ref_pre[3] * 0.4 + ref_pre[4] * 0.5)
    ref = (ref_total, *ref_pre)
    for got, want in zip(result, ref):
        np.testing.assert_allclose(np.asarray(got), np.asarray(want),
                                   rtol=1e-4, atol=1e-5)

    print("KERNEL_OK")
</pallas_src>

<mosaic_0001>
module attributes {stable_mosaic.version = 11 : i64} {
  func.func @_bcedice_kernel(%arg0: i32, %arg1: i32, %arg2: memref<4x128xf32, #tpu.memory_space<vmem>>, %arg3: memref<4x128xf32, #tpu.memory_space<vmem>>, %arg4: memref<4x128xf32, #tpu.memory_space<vmem>>, %arg5: memref<4x128xf32, #tpu.memory_space<vmem>>, %arg6: memref<4x128xf32, #tpu.memory_space<vmem>>, %arg7: memref<4x128xf32, #tpu.memory_space<vmem>>, %arg8: memref<4x128xf32, #tpu.memory_space<vmem>>, %arg9: memref<19x4x128xf32, #tpu.memory_space<vmem>>) attributes {dimension_semantics = [#tpu.dimension_semantics<parallel>, #tpu.dimension_semantics<arbitrary>], iteration_bounds = array<i64: 1, 1>, scalar_prefetch = 0 : i64, scratch_operands = 0 : i64, tpu.core_type = #tpu.core_type<tc>, window_params = [{transform_indices = @transform_0, window_bounds = array<i64: 4, 128>}, {transform_indices = @transform_1, window_bounds = array<i64: 4, 128>}, {transform_indices = @transform_2, window_bounds = array<i64: 4, 128>}, {transform_indices = @transform_3, window_bounds = array<i64: 4, 128>}, {transform_indices = @transform_4, window_bounds = array<i64: 4, 128>}, {transform_indices = @transform_5, window_bounds = array<i64: 4, 128>}, {transform_indices = @transform_6, window_bounds = array<i64: 4, 128>}, {transform_indices = @transform_7, window_bounds = array<i64: 19, 4, 128>}]} {
    %c0_i32 = arith.constant 0 : i32
    %0 = arith.cmpi eq, %arg1, %c0_i32 : i32
    %1 = arith.extui %0 : i1 to i32
    %c0_i32_0 = arith.constant 0 : i32
    %2 = arith.cmpi ne, %1, %c0_i32_0 : i32
    scf.if %2 {
      %cst_157 = arith.constant 0.000000e+00 : f32
      %274 = vector.broadcast %cst_157 : f32 to vector<19x4x128xf32>
      %c0_158 = arith.constant 0 : index
      %c0_159 = arith.constant 0 : index
      %c0_160 = arith.constant 0 : index
      %275 = vector.load %arg9[%c0_158, %c0_159, %c0_160] : memref<19x4x128xf32, #tpu.memory_space<vmem>>, vector<19x4x128xf32>
      tpu.vector_store %arg9[%c0_158, %c0_159, %c0_160], %274 {strides = array<i32>} : memref<19x4x128xf32, #tpu.memory_space<vmem>>, vector<19x4x128xf32>,
    } else {
    }
    %c0 = arith.constant 0 : index
    %c0_1 = arith.constant 0 : index
    %3 = vector.load %arg2[%c0, %c0_1] : memref<4x128xf32, #tpu.memory_space<vmem>>, vector<4x128xf32>
    %c18 = arith.constant 18 : index
    %c0_2 = arith.constant 0 : index
    %c0_3 = arith.constant 0 : index
    %4 = vector.load %arg9[%c18, %c0_2, %c0_3] : memref<19x4x128xf32, #tpu.memory_space<vmem>>, vector<1x4x128xf32>
    %5 = vector.shape_cast %4 : vector<1x4x128xf32> to vector<4x128xf32>
    %6 = arith.addf %5, %3 : vector<4x128xf32>
    %c18_4 = arith.constant 18 : index
    %c0_5 = arith.constant 0 : index
    %c0_6 = arith.constant 0 : index
    %7 = vector.load %arg9[%c18_4, %c0_5, %c0_6] : memref<19x4x128xf32, #tpu.memory_space<vmem>>, vector<1x4x128xf32>
    %8 = vector.shape_cast %7 : vector<1x4x128xf32> to vector<4x128xf32>
    %9 = vector.shape_cast %6 : vector<4x128xf32> to vector<1x4x128xf32>
    tpu.vector_store %arg9[%c18_4, %c0_5, %c0_6], %9 {strides = array<i32>} : memref<19x4x128xf32, #tpu.memory_space<vmem>>, vector<1x4x128xf32>,
    %c0_7 = arith.constant 0 : index
    %c0_8 = arith.constant 0 : index
    %10 = vector.load %arg3[%c0_7, %c0_8] : memref<4x128xf32, #tpu.memory_space<vmem>>, vector<4x128xf32>
    %cst = arith.constant -1.000000e+02 : f32
    %cst_9 = arith.constant 1.000000e+02 : f32
    %11 = vector.broadcast %cst : f32 to vector<4x128xf32>
    %12 = arith.maximumf %11, %10 : vector<4x128xf32>
    %13 = vector.broadcast %cst_9 : f32 to vector<4x128xf32>
    %14 = arith.minimumf %13, %12 : vector<4x128xf32>
    %15 = math.absf %14 : vector<4x128xf32>
    %cst_10 = arith.constant 0.000000e+00 : f32
    %16 = vector.broadcast %cst_10 : f32 to vector<4x128xf32>
    %17 = arith.subf %16, %15 : vector<4x128xf32>
    %18 = math.exp %17 : vector<4x128xf32>
    %cst_11 = arith.constant 1.000000e+00 : f32
    %19 = vector.broadcast %cst_11 : f32 to vector<4x128xf32>
    %20 = arith.addf %19, %18 : vector<4x128xf32>
    %cst_12 = arith.constant 1.000000e+00 : f32
    %21 = vector.broadcast %cst_12 : f32 to vector<4x128xf32>
    %22 = arith.divf %21, %20 : vector<4x128xf32>
    %cst_13 = arith.constant 0.000000e+00 : f32
    %23 = vector.broadcast %cst_13 : f32 to vector<4x128xf32>
    %24 = arith.cmpf oge, %14, %23 : vector<4x128xf32>
    %25 = arith.mulf %18, %22 : vector<4x128xf32>
    %26 = arith.select %24, %22, %25 : vector<4x128xi1>, vector<4x128xf32>
    %cst_14 = arith.constant 1.000000e+00 : f32
    %27 = vector.broadcast %cst_14 : f32 to vector<4x128xf32>
    %28 = arith.addf %27, %18 : vector<4x128xf32>
    %29 = math.log %28 : vector<4x128xf32>
    %cst_15 = arith.constant 0.000000e+00 : f32
    %30 = vector.broadcast %cst_15 : f32 to vector<4x128xf32>
    %31 = arith.maximumf %14, %30 : vector<4x128xf32>
    %32 = arith.mulf %14, %3 : vector<4x128xf32>
    %33 = arith.subf %31, %32 : vector<4x128xf32>
    %34 = arith.addf %33, %29 : vector<4x128xf32>
    %c0_16 = arith.constant 0 : index
    %c0_17 = arith.constant 0 : index
    %c0_18 = arith.constant 0 : index
    %35 = vector.load %arg9[%c0_16, %c0_17, %c0_18] : memref<19x4x128xf32, #tpu.memory_space<vmem>>, vector<1x4x128xf32>
    %36 = vector.shape_cast %35 : vector<1x4x128xf32> to vector<4x128xf32>
    %37 = arith.addf %36, %34 : vector<4x128xf32>
    %c0_19 = arith.constant 0 : index
    %c0_20 = arith.constant 0 : index
    %c0_21 = arith.constant 0 : index
    %38 = vector.load %arg9[%c0_19, %c0_20, %c0_21] : memref<19x4x128xf32, #tpu.memory_space<vmem>>, vector<1x4x128xf32>
    %39 = vector.shape_cast %38 : vector<1x4x128xf32> to vector<4x128xf32>
    %40 = vector.shape_cast %37 : vector<4x128xf32> to vector<1x4x128xf32>
    tpu.vector_store %arg9[%c0_19, %c0_20, %c0_21], %40 {strides = array<i32>} : memref<19x4x128xf32, #tpu.memory_space<vmem>>, vector<1x4x128xf32>,
    %c1 = arith.constant 1 : index
    %c0_22 = arith.constant 0 : index
    %c0_23 = arith.constant 0 : index
    %41 = vector.load %arg9[%c1, %c0_22, %c0_23] : memref<19x4x128xf32, #tpu.memory_space<vmem>>, vector<1x4x128xf32>
    %42 = vector.shape_cast %41 : vector<1x4x128xf32> to vector<4x128xf32>
    %43 = arith.addf %42, %26 : vector<4x128xf32>
    %c1_24 = arith.constant 1 : index
    %c0_25 = arith.constant 0 : index
    %c0_26 = arith.constant 0 : index
    %44 = vector.load %arg9[%c1_24, %c0_25, %c0_26] : memref<19x4x128xf32, #tpu.memory_space<vmem>>, vector<1x4x128xf32>
    %45 = vector.shape_cast %44 : vector<1x4x128xf32> to vector<4x128xf32>
    %46 = vector.shape_cast %43 : vector<4x128xf32> to vector<1x4x128xf32>
    tpu.vector_store %arg9[%c1_24, %c0_25, %c0_26], %46 {strides = array<i32>} : memref<19x4x128xf32, #tpu.memory_space<vmem>>, vector<1x4x128xf32>,
    %c2 = arith.constant 2 : index
    %c0_27 = arith.constant 0 : index
    %c0_28 = arith.constant 0 : index
    %47 = vector.load %arg9[%c2, %c0_27, %c0_28] : memref<19x4x128xf32, #tpu.memory_space<vmem>>, vector<1x4x128xf32>
    %48 = vector.shape_cast %47 : vector<1x4x128xf32> to vector<4x128xf32>
    %49 = arith.mulf %26, %3 : vector<4x128xf32>
    %50 = arith.addf %48, %49 : vector<4x128xf32>
    %c2_29 = arith.constant 2 : index
    %c0_30 = arith.constant 0 : index
    %c0_31 = arith.constant 0 : index
    %51 = vector.load %arg9[%c2_29, %c0_30, %c0_31] : memref<19x4x128xf32, #tpu.memory_space<vmem>>, vector<1x4x128xf32>
    %52 = vector.shape_cast %51 : vector<1x4x128xf32> to vector<4x128xf32>
    %53 = vector.shape_cast %50 : vector<4x128xf32> to vector<1x4x128xf32>
    tpu.vector_store %arg9[%c2_29, %c0_30, %c0_31], %53 {strides = array<i32>} : memref<19x4x128xf32, #tpu.memory_space<vmem>>, vector<1x4x128xf32>,
    %c0_32 = arith.constant 0 : index
    %c0_33 = arith.constant 0 : index
    %54 = vector.load %arg4[%c0_32, %c0_33] : memref<4x128xf32, #tpu.memory_space<vmem>>, vector<4x128xf32>
    %cst_34 = arith.constant -1.000000e+02 : f32
    %cst_35 = arith.constant 1.000000e+02 : f32
    %55 = vector.broadcast %cst_34 : f32 to vector<4x128xf32>
    %56 = arith.maximumf %55, %54 : vector<4x128xf32>
    %57 = vector.broadcast %cst_35 : f32 to vector<4x128xf32>
    %58 = arith.minimumf %57, %56 : vector<4x128xf32>
    %59 = math.absf %58 : vector<4x128xf32>
    %cst_36 = arith.constant 0.000000e+00 : f32
    %60 = vector.broadcast %cst_36 : f32 to vector<4x128xf32>
    %61 = arith.subf %60, %59 : vector<4x128xf32>
    %62 = math.exp %61 : vector<4x128xf32>
    %cst_37 = arith.constant 1.000000e+00 : f32
    %63 = vector.broadcast %cst_37 : f32 to vector<4x128xf32>
    %64 = arith.addf %63, %62 : vector<4x128xf32>
    %cst_38 = arith.constant 1.000000e+00 : f32
    %65 = vector.broadcast %cst_38 : f32 to vector<4x128xf32>
    %66 = arith.divf %65, %64 : vector<4x128xf32>
    %cst_39 = arith.constant 0.000000e+00 : f32
    %67 = vector.broadcast %cst_39 : f32 to vector<4x128xf32>
    %68 = arith.cmpf oge, %58, %67 : vector<4x128xf32>
    %69 = arith.mulf %62, %66 : vector<4x128xf32>
    %70 = arith.select %68, %66, %69 : vector<4x128xi1>, vector<4x128xf32>
    %cst_40 = arith.constant 1.000000e+00 : f32
    %71 = vector.broadcast %cst_40 : f32 to vector<4x128xf32>
    %72 = arith.addf %71, %62 : vector<4x128xf32>
    %73 = math.log %72 : vector<4x128xf32>
    %cst_41 = arith.constant 0.000000e+00 : f32
    %74 = vector.broadcast %cst_41 : f32 to vector<4x128xf32>
    %75 = arith.maximumf %58, %74 : vector<4x128xf32>
    %76 = arith.mulf %58, %3 : vector<4x128xf32>
    %77 = arith.subf %75, %76 : vector<4x128xf32>
    %78 = arith.addf %77, %73 : vector<4x128xf32>
    %c3 = arith.constant 3 : index
    %c0_42 = arith.constant 0 : index
    %c0_43 = arith.constant 0 : index
    %79 = vector.load %arg9[%c3, %c0_42, %c0_43] : memref<19x4x128xf32, #tpu.memory_space<vmem>>, vector<1x4x128xf32>
    %80 = vector.shape_cast %79 : vector<1x4x128xf32> to vector<4x128xf32>
    %81 = arith.addf %80, %78 : vector<4x128xf32>
    %c3_44 = arith.constant 3 : index
    %c0_45 = arith.constant 0 : index
    %c0_46 = arith.constant 0 : index
    %82 = vector.load %arg9[%c3_44, %c0_45, %c0_46] : memref<19x4x128xf32, #tpu.memory_space<vmem>>, vector<1x4x128xf32>
    %83 = vector.shape_cast %82 : vector<1x4x128xf32> to vector<4x128xf32>
    %84 = vector.shape_cast %81 : vector<4x128xf32> to vector<1x4x128xf32>
    tpu.vector_store %arg9[%c3_44, %c0_45, %c0_46], %84 {strides = array<i32>} : memref<19x4x128xf32, #tpu.memory_space<vmem>>, vector<1x4x128xf32>,
    %c4 = arith.constant 4 : index
    %c0_47 = arith.constant 0 : index
    %c0_48 = arith.constant 0 : index
    %85 = vector.load %arg9[%c4, %c0_47, %c0_48] : memref<19x4x128xf32, #tpu.memory_space<vmem>>, vector<1x4x128xf32>
    %86 = vector.shape_cast %85 : vector<1x4x128xf32> to vector<4x128xf32>
    %87 = arith.addf %86, %70 : vector<4x128xf32>
    %c4_49 = arith.constant 4 : index
    %c0_50 = arith.constant 0 : index
    %c0_51 = arith.constant 0 : index
    %88 = vector.load %arg9[%c4_49, %c0_50, %c0_51] : memref<19x4x128xf32, #tpu.memory_space<vmem>>, vector<1x4x128xf32>
    %89 = vector.shape_cast %88 : vector<1x4x128xf32> to vector<4x128xf32>
    %90 = vector.shape_cast %87 : vector<4x128xf32> to vector<1x4x128xf32>
    tpu.vector_store %arg9[%c4_49, %c0_50, %c0_51], %90 {strides = array<i32>} : memref<19x4x128xf32, #tpu.memory_space<vmem>>, vector<1x4x128xf32>,
    %c5 = arith.constant 5 : index
    %c0_52 = arith.constant 0 : index
    %c0_53 = arith.constant 0 : index
    %91 = vector.load %arg9[%c5, %c0_52, %c0_53] : memref<19x4x128xf32, #tpu.memory_space<vmem>>, vector<1x4x128xf32>
    %92 = vector.shape_cast %91 : vector<1x4x128xf32> to vector<4x128xf32>
    %93 = arith.mulf %70, %3 : vector<4x128xf32>
    %94 = arith.addf %92, %93 : vector<4x128xf32>
    %c5_54 = arith.constant 5 : index
    %c0_55 = arith.constant 0 : index
    %c0_56 = arith.constant 0 : index
    %95 = vector.load %arg9[%c5_54, %c0_55, %c0_56] : memref<19x4x128xf32, #tpu.memory_space<vmem>>, vector<1x4x128xf32>
    %96 = vector.shape_cast %95 : vector<1x4x128xf32> to vector<4x128xf32>
    %97 = vector.shape_cast %94 : vector<4x128xf32> to vector<1x4x128xf32>
    tpu.vector_store %arg9[%c5_54, %c0_55, %c0_56], %97 {strides = array<i32>} : memref<19x4x128xf32, #tpu.memory_space<vmem>>, vector<1x4x128xf32>,
    %c0_57 = arith.constant 0 : index
    %c0_58 = arith.constant 0 : index
    %98 = vector.load %arg5[%c0_57, %c0_58] : memref<4x128xf32, #tpu.memory_space<vmem>>, vector<4x128xf32>
    %cst_59 = arith.constant -1.000000e+02 : f32
    %cst_60 = arith.constant 1.000000e+02 : f32
    %99 = vector.broadcast %cst_59 : f32 to vector<4x128xf32>
    %100 = arith.maximumf %99, %98 : vector<4x128xf32>
    %101 = vector.broadcast %cst_60 : f32 to vector<4x128xf32>
    %102 = arith.minimumf %101, %100 : vector<4x128xf32>
    %103 = math.absf %102 : vector<4x128xf32>
    %cst_61 = arith.constant 0.000000e+00 : f32
    %104 = vector.broadcast %cst_61 : f32 to vector<4x128xf32>
    %105 = arith.subf %104, %103 : vector<4x128xf32>
    %106 = math.exp %105 : vector<4x128xf32>
    %cst_62 = arith.constant 1.000000e+00 : f32
    %107 = vector.broadcast %cst_62 : f32 to vector<4x128xf32>
    %108 = arith.addf %107, %106 : vector<4x128xf32>
    %cst_63 = arith.constant 1.000000e+00 : f32
    %109 = vector.broadcast %cst_63 : f32 to vector<4x128xf32>
    %110 = arith.divf %109, %108 : vector<4x128xf32>
    %cst_64 = arith.constant 0.000000e+00 : f32
    %111 = vector.broadcast %cst_64 : f32 to vector<4x128xf32>
    %112 = arith.cmpf oge, %102, %111 : vector<4x128xf32>
    %113 = arith.mulf %106, %110 : vector<4x128xf32>
    %114 = arith.select %112, %110, %113 : vector<4x128xi1>, vector<4x128xf32>
    %cst_65 = arith.constant 1.000000e+00 : f32
    %115 = vector.broadcast %cst_65 : f32 to vector<4x128xf32>
    %116 = arith.addf %115, %106 : vector<4x128xf32>
    %117 = math.log %116 : vector<4x128xf32>
    %cst_66 = arith.constant 0.000000e+00 : f32
    %118 = vector.broadcast %cst_66 : f32 to vector<4x128xf32>
    %119 = arith.maximumf %102, %118 : vector<4x128xf32>
    %120 = arith.mulf %102, %3 : vector<4x128xf32>
    %121 = arith.subf %119, %120 : vector<4x128xf32>
    %122 = arith.addf %121, %117 : vector<4x128xf32>
    %c6 = arith.constant 6 : index
    %c0_67 = arith.constant 0 : index
    %c0_68 = arith.constant 0 : index
    %123 = vector.load %arg9[%c6, %c0_67, %c0_68] : memref<19x4x128xf32, #tpu.memory_space<vmem>>, vector<1x4x128xf32>
    %124 = vector.shape_cast %123 : vector<1x4x128xf32> to vector<4x128xf32>
    %125 = arith.addf %124, %122 : vector<4x128xf32>
    %c6_69 = arith.constant 6 : index
    %c0_70 = arith.constant 0 : index
    %c0_71 = arith.constant 0 : index
    %126 = vector.load %arg9[%c6_69, %c0_70, %c0_71] : memref<19x4x128xf32, #tpu.memory_space<vmem>>, vector<1x4x128xf32>
    %127 = vector.shape_cast %126 : vector<1x4x128xf32> to vector<4x128xf32>
    %128 = vector.shape_cast %125 : vector<4x128xf32> to vector<1x4x128xf32>
    tpu.vector_store %arg9[%c6_69, %c0_70, %c0_71], %128 {strides = array<i32>} : memref<19x4x128xf32, #tpu.memory_space<vmem>>, vector<1x4x128xf32>,
    %c7 = arith.constant 7 : index
    %c0_72 = arith.constant 0 : index
    %c0_73 = arith.constant 0 : index
    %129 = vector.load %arg9[%c7, %c0_72, %c0_73] : memref<19x4x128xf32, #tpu.memory_space<vmem>>, vector<1x4x128xf32>
    %130 = vector.shape_cast %129 : vector<1x4x128xf32> to vector<4x128xf32>
    %131 = arith.addf %130, %114 : vector<4x128xf32>
    %c7_74 = arith.constant 7 : index
    %c0_75 = arith.constant 0 : index
    %c0_76 = arith.constant 0 : index
    %132 = vector.load %arg9[%c7_74, %c0_75, %c0_76] : memref<19x4x128xf32, #tpu.memory_space<vmem>>, vector<1x4x128xf32>
    %133 = vector.shape_cast %132 : vector<1x4x128xf32> to vector<4x128xf32>
    %134 = vector.shape_cast %131 : vector<4x128xf32> to vector<1x4x128xf32>
    tpu.vector_store %arg9[%c7_74, %c0_75, %c0_76], %134 {strides = array<i32>} : memref<19x4x128xf32, #tpu.memory_space<vmem>>, vector<1x4x128xf32>,
    %c8 = arith.constant 8 : index
    %c0_77 = arith.constant 0 : index
    %c0_78 = arith.constant 0 : index
    %135 = vector.load %arg9[%c8, %c0_77, %c0_78] : memref<19x4x128xf32, #tpu.memory_space<vmem>>, vector<1x4x128xf32>
    %136 = vector.shape_cast %135 : vector<1x4x128xf32> to vector<4x128xf32>
    %137 = arith.mulf %114, %3 : vector<4x128xf32>
    %138 = arith.addf %136, %137 : vector<4x128xf32>
    %c8_79 = arith.constant 8 : index
    %c0_80 = arith.constant 0 : index
    %c0_81 = arith.constant 0 : index
    %139 = vector.load %arg9[%c8_79, %c0_80, %c0_81] : memref<19x4x128xf32, #tpu.memory_space<vmem>>, vector<1x4x128xf32>
    %140 = vector.shape_cast %139 : vector<1x4x128xf32> to vector<4x128xf32>
    %141 = vector.shape_cast %138 : vector<4x128xf32> to vector<1x4x128xf32>
    tpu.vector_store %arg9[%c8_79, %c0_80, %c0_81], %141 {strides = array<i32>} : memref<19x4x128xf32, #tpu.memory_space<vmem>>, vector<1x4x128xf32>,
    %c0_82 = arith.constant 0 : index
    %c0_83 = arith.constant 0 : index
    %142 = vector.load %arg6[%c0_82, %c0_83] : memref<4x128xf32, #tpu.memory_space<vmem>>, vector<4x128xf32>
    %cst_84 = arith.constant -1.000000e+02 : f32
    %cst_85 = arith.constant 1.000000e+02 : f32
    %143 = vector.broadcast %cst_84 : f32 to vector<4x128xf32>
    %144 = arith.maximumf %143, %142 : vector<4x128xf32>
    %145 = vector.broadcast %cst_85 : f32 to vector<4x128xf32>
    %146 = arith.minimumf %145, %144 : vector<4x128xf32>
    %147 = math.absf %146 : vector<4x128xf32>
    %cst_86 = arith.constant 0.000000e+00 : f32
    %148 = vector.broadcast %cst_86 : f32 to vector<4x128xf32>
    %149 = arith.subf %148, %147 : vector<4x128xf32>
    %150 = math.exp %149 : vector<4x128xf32>
    %cst_87 = arith.constant 1.000000e+00 : f32
    %151 = vector.broadcast %cst_87 : f32 to vector<4x128xf32>
    %152 = arith.addf %151, %150 : vector<4x128xf32>
    %cst_88 = arith.constant 1.000000e+00 : f32
    %153 = vector.broadcast %cst_88 : f32 to vector<4x128xf32>
    %154 = arith.divf %153, %152 : vector<4x128xf32>
    %cst_89 = arith.constant 0.000000e+00 : f32
    %155 = vector.broadcast %cst_89 : f32 to vector<4x128xf32>
    %156 = arith.cmpf oge, %146, %155 : vector<4x128xf32>
    %157 = arith.mulf %150, %154 : vector<4x128xf32>
    %158 = arith.select %156, %154, %157 : vector<4x128xi1>, vector<4x128xf32>
    %cst_90 = arith.constant 1.000000e+00 : f32
    %159 = vector.broadcast %cst_90 : f32 to vector<4x128xf32>
    %160 = arith.addf %159, %150 : vector<4x128xf32>
    %161 = math.log %160 : vector<4x128xf32>
    %cst_91 = arith.constant 0.000000e+00 : f32
    %162 = vector.broadcast %cst_91 : f32 to vector<4x128xf32>
    %163 = arith.maximumf %146, %162 : vector<4x128xf32>
    %164 = arith.mulf %146, %3 : vector<4x128xf32>
    %165 = arith.subf %163, %164 : vector<4x128xf32>
    %166 = arith.addf %165, %161 : vector<4x128xf32>
    %c9 = arith.constant 9 : index
    %c0_92 = arith.constant 0 : index
    %c0_93 = arith.constant 0 : index
    %167 = vector.load %arg9[%c9, %c0_92, %c0_93] : memref<19x4x128xf32, #tpu.memory_space<vmem>>, vector<1x4x128xf32>
    %168 = vector.shape_cast %167 : vector<1x4x128xf32> to vector<4x128xf32>
    %169 = arith.addf %168, %166 : vector<4x128xf32>
    %c9_94 = arith.constant 9 : index
    %c0_95 = arith.constant 0 : index
    %c0_96 = arith.constant 0 : index
    %170 = vector.load %arg9[%c9_94, %c0_95, %c0_96] : memref<19x4x128xf32, #tpu.memory_space<vmem>>, vector<1x4x128xf32>
    %171 = vector.shape_cast %170 : vector<1x4x128xf32> to vector<4x128xf32>
    %172 = vector.shape_cast %169 : vector<4x128xf32> to vector<1x4x128xf32>
    tpu.vector_store %arg9[%c9_94, %c0_95, %c0_96], %172 {strides = array<i32>} : memref<19x4x128xf32, #tpu.memory_space<vmem>>, vector<1x4x128xf32>,
    %c10 = arith.constant 10 : index
    %c0_97 = arith.constant 0 : index
    %c0_98 = arith.constant 0 : index
    %173 = vector.load %arg9[%c10, %c0_97, %c0_98] : memref<19x4x128xf32, #tpu.memory_space<vmem>>, vector<1x4x128xf32>
    %174 = vector.shape_cast %173 : vector<1x4x128xf32> to vector<4x128xf32>
    %175 = arith.addf %174, %158 : vector<4x128xf32>
    %c10_99 = arith.constant 10 : index
    %c0_100 = arith.constant 0 : index
    %c0_101 = arith.constant 0 : index
    %176 = vector.load %arg9[%c10_99, %c0_100, %c0_101] : memref<19x4x128xf32, #tpu.memory_space<vmem>>, vector<1x4x128xf32>
    %177 = vector.shape_cast %176 : vector<1x4x128xf32> to vector<4x128xf32>
    %178 = vector.shape_cast %175 : vector<4x128xf32> to vector<1x4x128xf32>
    tpu.vector_store %arg9[%c10_99, %c0_100, %c0_101], %178 {strides = array<i32>} : memref<19x4x128xf32, #tpu.memory_space<vmem>>, vector<1x4x128xf32>,
    %c11 = arith.constant 11 : index
    %c0_102 = arith.constant 0 : index
    %c0_103 = arith.constant 0 : index
    %179 = vector.load %arg9[%c11, %c0_102, %c0_103] : memref<19x4x128xf32, #tpu.memory_space<vmem>>, vector<1x4x128xf32>
    %180 = vector.shape_cast %179 : vector<1x4x128xf32> to vector<4x128xf32>
    %181 = arith.mulf %158, %3 : vector<4x128xf32>
    %182 = arith.addf %180, %181 : vector<4x128xf32>
    %c11_104 = arith.constant 11 : index
    %c0_105 = arith.constant 0 : index
    %c0_106 = arith.constant 0 : index
    %183 = vector.load %arg9[%c11_104, %c0_105, %c0_106] : memref<19x4x128xf32, #tpu.memory_space<vmem>>, vector<1x4x128xf32>
    %184 = vector.shape_cast %183 : vector<1x4x128xf32> to vector<4x128xf32>
    %185 = vector.shape_cast %182 : vector<4x128xf32> to vector<1x4x128xf32>
    tpu.vector_store %arg9[%c11_104, %c0_105, %c0_106], %185 {strides = array<i32>} : memref<19x4x128xf32, #tpu.memory_space<vmem>>, vector<1x4x128xf32>,
    %c0_107 = arith.constant 0 : index
    %c0_108 = arith.constant 0 : index
    %186 = vector.load %arg7[%c0_107, %c0_108] : memref<4x128xf32, #tpu.memory_space<vmem>>, vector<4x128xf32>
    %cst_109 = arith.constant -1.000000e+02 : f32
    %cst_110 = arith.constant 1.000000e+02 : f32
    %187 = vector.broadcast %cst_109 : f32 to vector<4x128xf32>
    %188 = arith.maximumf %187, %186 : vector<4x128xf32>
    %189 = vector.broadcast %cst_110 : f32 to vector<4x128xf32>
    %190 = arith.minimumf %189, %188 : vector<4x128xf32>
    %191 = math.absf %190 : vector<4x128xf32>
    %cst_111 = arith.constant 0.000000e+00 : f32
    %192 = vector.broadcast %cst_111 : f32 to vector<4x128xf32>
    %193 = arith.subf %192, %191 : vector<4x128xf32>
    %194 = math.exp %193 : vector<4x128xf32>
    %cst_112 = arith.constant 1.000000e+00 : f32
    %195 = vector.broadcast %cst_112 : f32 to vector<4x128xf32>
    %196 = arith.addf %195, %194 : vector<4x128xf32>
    %cst_113 = arith.constant 1.000000e+00 : f32
    %197 = vector.broadcast %cst_113 : f32 to vector<4x128xf32>
    %198 = arith.divf %197, %196 : vector<4x128xf32>
    %cst_114 = arith.constant 0.000000e+00 : f32
    %199 = vector.broadcast %cst_114 : f32 to vector<4x128xf32>
    %200 = arith.cmpf oge, %190, %199 : vector<4x128xf32>
    %201 = arith.mulf %194, %198 : vector<4x128xf32>
    %202 = arith.select %200, %198, %201 : vector<4x128xi1>, vector<4x128xf32>
    %cst_115 = arith.constant 1.000000e+00 : f32
    %203 = vector.broadcast %cst_115 : f32 to vector<4x128xf32>
    %204 = arith.addf %203, %194 : vector<4x128xf32>
    %205 = math.log %204 : vector<4x128xf32>
    %cst_116 = arith.constant 0.000000e+00 : f32
    %206 = vector.broadcast %cst_116 : f32 to vector<4x128xf32>
    %207 = arith.maximumf %190, %206 : vector<4x128xf32>
    %208 = arith.mulf %190, %3 : vector<4x128xf32>
    %209 = arith.subf %207, %208 : vector<4x128xf32>
    %210 = arith.addf %209, %205 : vector<4x128xf32>
    %c12 = arith.constant 12 : index
    %c0_117 = arith.constant 0 : index
    %c0_118 = arith.constant 0 : index
    %211 = vector.load %arg9[%c12, %c0_117, %c0_118] : memref<19x4x128xf32, #tpu.memory_space<vmem>>, vector<1x4x128xf32>
    %212 = vector.shape_cast %211 : vector<1x4x128xf32> to vector<4x128xf32>
    %213 = arith.addf %212, %210 : vector<4x128xf32>
    %c12_119 = arith.constant 12 : index
    %c0_120 = arith.constant 0 : index
    %c0_121 = arith.constant 0 : index
    %214 = vector.load %arg9[%c12_119, %c0_120, %c0_121] : memref<19x4x128xf32, #tpu.memory_space<vmem>>, vector<1x4x128xf32>
    %215 = vector.shape_cast %214 : vector<1x4x128xf32> to vector<4x128xf32>
    %216 = vector.shape_cast %213 : vector<4x128xf32> to vector<1x4x128xf32>
    tpu.vector_store %arg9[%c12_119, %c0_120, %c0_121], %216 {strides = array<i32>} : memref<19x4x128xf32, #tpu.memory_space<vmem>>, vector<1x4x128xf32>,
    %c13 = arith.constant 13 : index
    %c0_122 = arith.constant 0 : index
    %c0_123 = arith.constant 0 : index
    %217 = vector.load %arg9[%c13, %c0_122, %c0_123] : memref<19x4x128xf32, #tpu.memory_space<vmem>>, vector<1x4x128xf32>
    %218 = vector.shape_cast %217 : vector<1x4x128xf32> to vector<4x128xf32>
    %219 = arith.addf %218, %202 : vector<4x128xf32>
    %c13_124 = arith.constant 13 : index
    %c0_125 = arith.constant 0 : index
    %c0_126 = arith.constant 0 : index
    %220 = vector.load %arg9[%c13_124, %c0_125, %c0_126] : memref<19x4x128xf32, #tpu.memory_space<vmem>>, vector<1x4x128xf32>
    %221 = vector.shape_cast %220 : vector<1x4x128xf32> to vector<4x128xf32>
    %222 = vector.shape_cast %219 : vector<4x128xf32> to vector<1x4x128xf32>
    tpu.vector_store %arg9[%c13_124, %c0_125, %c0_126], %222 {strides = array<i32>} : memref<19x4x128xf32, #tpu.memory_space<vmem>>, vector<1x4x128xf32>,
    %c14 = arith.constant 14 : index
    %c0_127 = arith.constant 0 : index
    %c0_128 = arith.constant 0 : index
    %223 = vector.load %arg9[%c14, %c0_127, %c0_128] : memref<19x4x128xf32, #tpu.memory_space<vmem>>, vector<1x4x128xf32>
    %224 = vector.shape_cast %223 : vector<1x4x128xf32> to vector<4x128xf32>
    %225 = arith.mulf %202, %3 : vector<4x128xf32>
    %226 = arith.addf %224, %225 : vector<4x128xf32>
    %c14_129 = arith.constant 14 : index
    %c0_130 = arith.constant 0 : index
    %c0_131 = arith.constant 0 : index
    %227 = vector.load %arg9[%c14_129, %c0_130, %c0_131] : memref<19x4x128xf32, #tpu.memory_space<vmem>>, vector<1x4x128xf32>
    %228 = vector.shape_cast %227 : vector<1x4x128xf32> to vector<4x128xf32>
    %229 = vector.shape_cast %226 : vector<4x128xf32> to vector<1x4x128xf32>
    tpu.vector_store %arg9[%c14_129, %c0_130, %c0_131], %229 {strides = array<i32>} : memref<19x4x128xf32, #tpu.memory_space<vmem>>, vector<1x4x128xf32>,
    %c0_132 = arith.constant 0 : index
    %c0_133 = arith.constant 0 : index
    %230 = vector.load %arg8[%c0_132, %c0_133] : memref<4x128xf32, #tpu.memory_space<vmem>>, vector<4x128xf32>
    %cst_134 = arith.constant -1.000000e+02 : f32
    %cst_135 = arith.constant 1.000000e+02 : f32
    %231 = vector.broadcast %cst_134 : f32 to vector<4x128xf32>
    %232 = arith.maximumf %231, %230 : vector<4x128xf32>
    %233 = vector.broadcast %cst_135 : f32 to vector<4x128xf32>
    %234 = arith.minimumf %233, %232 : vector<4x128xf32>
    %235 = math.absf %234 : vector<4x128xf32>
    %cst_136 = arith.constant 0.000000e+00 : f32
    %236 = vector.broadcast %cst_136 : f32 to vector<4x128xf32>
    %237 = arith.subf %236, %235 : vector<4x128xf32>
    %238 = math.exp %237 : vector<4x128xf32>
    %cst_137 = arith.constant 1.000000e+00 : f32
    %239 = vector.broadcast %cst_137 : f32 to vector<4x128xf32>
    %240 = arith.addf %239, %238 : vector<4x128xf32>
    %cst_138 = arith.constant 1.000000e+00 : f32
    %241 = vector.broadcast %cst_138 : f32 to vector<4x128xf32>
    %242 = arith.divf %241, %240 : vector<4x128xf32>
    %cst_139 = arith.constant 0.000000e+00 : f32
    %243 = vector.broadcast %cst_139 : f32 to vector<4x128xf32>
    %244 = arith.cmpf oge, %234, %243 : vector<4x128xf32>
    %245 = arith.mulf %238, %242 : vector<4x128xf32>
    %246 = arith.select %244, %242, %245 : vector<4x128xi1>, vector<4x128xf32>
    %cst_140 = arith.constant 1.000000e+00 : f32
    %247 = vector.broadcast %cst_140 : f32 to vector<4x128xf32>
    %248 = arith.addf %247, %238 : vector<4x128xf32>
    %249 = math.log %248 : vector<4x128xf32>
    %cst_141 = arith.constant 0.000000e+00 : f32
    %250 = vector.broadcast %cst_141 : f32 to vector<4x128xf32>
    %251 = arith.maximumf %234, %250 : vector<4x128xf32>
    %252 = arith.mulf %234, %3 : vector<4x128xf32>
    %253 = arith.subf %251, %252 : vector<4x128xf32>
    %254 = arith.addf %253, %249 : vector<4x128xf32>
    %c15 = arith.constant 15 : index
    %c0_142 = arith.constant 0 : index
    %c0_143 = arith.constant 0 : index
    %255 = vector.load %arg9[%c15, %c0_142, %c0_143] : memref<19x4x128xf32, #tpu.memory_space<vmem>>, vector<1x4x128xf32>
    %256 = vector.shape_cast %255 : vector<1x4x128xf32> to vector<4x128xf32>
    %257 = arith.addf %256, %254 : vector<4x128xf32>
    %c15_144 = arith.constant 15 : index
    %c0_145 = arith.constant 0 : index
    %c0_146 = arith.constant 0 : index
    %258 = vector.load %arg9[%c15_144, %c0_145, %c0_146] : memref<19x4x128xf32, #tpu.memory_space<vmem>>, vector<1x4x128xf32>
    %259 = vector.shape_cast %258 : vector<1x4x128xf32> to vector<4x128xf32>
    %260 = vector.shape_cast %257 : vector<4x128xf32> to vector<1x4x128xf32>
    tpu.vector_store %arg9[%c15_144, %c0_145, %c0_146], %260 {strides = array<i32>} : memref<19x4x128xf32, #tpu.memory_space<vmem>>, vector<1x4x128xf32>,
    %c16 = arith.constant 16 : index
    %c0_147 = arith.constant 0 : index
    %c0_148 = arith.constant 0 : index
    %261 = vector.load %arg9[%c16, %c0_147, %c0_148] : memref<19x4x128xf32, #tpu.memory_space<vmem>>, vector<1x4x128xf32>
    %262 = vector.shape_cast %261 : vector<1x4x128xf32> to vector<4x128xf32>
    %263 = arith.addf %262, %246 : vector<4x128xf32>
    %c16_149 = arith.constant 16 : index
    %c0_150 = arith.constant 0 : index
    %c0_151 = arith.constant 0 : index
    %264 = vector.load %arg9[%c16_149, %c0_150, %c0_151] : memref<19x4x128xf32, #tpu.memory_space<vmem>>, vector<1x4x128xf32>
    %265 = vector.shape_cast %264 : vector<1x4x128xf32> to vector<4x128xf32>
    %266 = vector.shape_cast %263 : vector<4x128xf32> to vector<1x4x128xf32>
    tpu.vector_store %arg9[%c16_149, %c0_150, %c0_151], %266 {strides = array<i32>} : memref<19x4x128xf32, #tpu.memory_space<vmem>>, vector<1x4x128xf32>,
    %c17 = arith.constant 17 : index
    %c0_152 = arith.constant 0 : index
    %c0_153 = arith.constant 0 : index
    %267 = vector.load %arg9[%c17, %c0_152, %c0_153] : memref<19x4x128xf32, #tpu.memory_space<vmem>>, vector<1x4x128xf32>
    %268 = vector.shape_cast %267 : vector<1x4x128xf32> to vector<4x128xf32>
    %269 = arith.mulf %246, %3 : vector<4x128xf32>
    %270 = arith.addf %268, %269 : vector<4x128xf32>
    %c17_154 = arith.constant 17 : index
    %c0_155 = arith.constant 0 : index
    %c0_156 = arith.constant 0 : index
    %271 = vector.load %arg9[%c17_154, %c0_155, %c0_156] : memref<19x4x128xf32, #tpu.memory_space<vmem>>, vector<1x4x128xf32>
    %272 = vector.shape_cast %271 : vector<1x4x128xf32> to vector<4x128xf32>
    %273 = vector.shape_cast %270 : vector<4x128xf32> to vector<1x4x128xf32>
    tpu.vector_store %arg9[%c17_154, %c0_155, %c0_156], %273 {strides = array<i32>} : memref<19x4x128xf32, #tpu.memory_space<vmem>>, vector<1x4x128xf32>,
    return
  }
  func.func @transform_0(%arg0: i32, %arg1: i32) -> (i32, i32) {
    %c1_i32 = arith.constant 1 : i32
    %0 = arith.muli %arg0, %c1_i32 : i32
    %1 = arith.addi %0, %arg1 : i32
    %c0_i32 = arith.constant 0 : i32
    %c0_i32_0 = arith.constant 0 : i32
    return %c0_i32, %1 : i32, i32
  }
  func.func @transform_1(%arg0: i32, %arg1: i32) -> (i32, i32) {
    %c1_i32 = arith.constant 1 : i32
    %0 = arith.muli %arg0, %c1_i32 : i32
    %1 = arith.addi %0, %arg1 : i32
    %c0_i32 = arith.constant 0 : i32
    %c0_i32_0 = arith.constant 0 : i32
    return %c0_i32, %1 : i32, i32
  }
  func.func @transform_2(%arg0: i32, %arg1: i32) -> (i32, i32) {
    %c1_i32 = arith.constant 1 : i32
    %0 = arith.muli %arg0, %c1_i32 : i32
    %1 = arith.addi %0, %arg1 : i32
    %c0_i32 = arith.constant 0 : i32
    %c0_i32_0 = arith.constant 0 : i32
    return %c0_i32, %1 : i32, i32
  }
  func.func @transform_3(%arg0: i32, %arg1: i32) -> (i32, i32) {
    %c1_i32 = arith.constant 1 : i32
    %0 = arith.muli %arg0, %c1_i32 : i32
    %1 = arith.addi %0, %arg1 : i32
    %c0_i32 = arith.constant 0 : i32
    %c0_i32_0 = arith.constant 0 : i32
    return %c0_i32, %1 : i32, i32
  }
  func.func @transform_4(%arg0: i32, %arg1: i32) -> (i32, i32) {
    %c1_i32 = arith.constant 1 : i32
    %0 = arith.muli %arg0, %c1_i32 : i32
    %1 = arith.addi %0, %arg1 : i32
    %c0_i32 = arith.constant 0 : i32
    %c0_i32_0 = arith.constant 0 : i32
    return %c0_i32, %1 : i32, i32
  }
  func.func @transform_5(%arg0: i32, %arg1: i32) -> (i32, i32) {
    %c1_i32 = arith.constant 1 : i32
    %0 = arith.muli %arg0, %c1_i32 : i32
    %1 = arith.addi %0, %arg1 : i32
    %c0_i32 = arith.constant 0 : i32
    %c0_i32_0 = arith.constant 0 : i32
    return %c0_i32, %1 : i32, i32
  }
  func.func @transform_6(%arg0: i32, %arg1: i32) -> (i32, i32) {
    %c1_i32 = arith.constant 1 : i32
    %0 = arith.muli %arg0, %c1_i32 : i32
    %1 = arith.addi %0, %arg1 : i32
    %c0_i32 = arith.constant 0 : i32
    %c0_i32_0 = arith.constant 0 : i32
    return %c0_i32, %1 : i32, i32
  }
  func.func @transform_7(%arg0: i32, %arg1: i32) -> (i32, i32, i32) {
    %c0_i32 = arith.constant 0 : i32
    %c0_i32_0 = arith.constant 0 : i32
    %c0_i32_1 = arith.constant 0 : i32
    return %arg0, %c0_i32, %c0_i32_0 : i32, i32, i32
  }
}

</mosaic_0001>

<llo_original>
// kernel: gt_bcedice_loss_new1.1
$region0: #{gt_bcedice_loss_new1.1}
  #allocation0 [shape = 'u32[]', space=smem, size = 0x4, offset = 0x4, fixed_abs, tag = 'smem constant byte address 0x4 - core index']
  #allocation1 [shape = 'u32[72,128]{1,0:T(1,128)}', space=vmem, size = 0x9000, scoped, tag = 'internal scratch']
  %s0 = inlined_call_operand.vmem [shape: f32[4,128], index: 0, kind: input, shape index: {}]
  %s1 = inlined_call_operand.vmem [shape: f32[4,128], index: 1, kind: input, shape index: {}]
  %s2 = inlined_call_operand.vmem [shape: f32[4,128], index: 2, kind: input, shape index: {}]
  %s3 = inlined_call_operand.vmem [shape: f32[4,128], index: 3, kind: input, shape index: {}]
  %s4 = inlined_call_operand.vmem [shape: f32[4,128], index: 4, kind: input, shape index: {}]
  %s5 = inlined_call_operand.vmem [shape: f32[4,128], index: 5, kind: input, shape index: {}]
  %s6 = inlined_call_operand.vmem [shape: f32[4,128], index: 6, kind: input, shape index: {}]
  %s7 = inlined_call_operand.vmem [shape: f32[19,4,128], index: 7, kind: output, shape index: {}]
  %s8 = sld [smem:[#allocation0]]
  $region42: #{gt_bcedice_loss_new1.1} parent=0
    _
  %s10 = ssub.s32 1, %s8
  %s11 = scalar_select 0, %s10, %s8
  // Predicated region
  $region2: #{gt_bcedice_loss_new1.1} parent=0 // pred_check
    _
  $region3: #{gt_bcedice_loss_new1.1} parent=0 // pred_check_branch
    %13 = sbr.rel (0) target = $region5
  $region4: #{gt_bcedice_loss_new1.1} parent=0 // pred_region
    %s14 = sadd.s32 0, 0
    %p15 = scmp.lt.s32.totalorder %s14, 0
    %s16 = scalar_select %p15, %s14, 0
    %s17 = smul.addr %s16, 4
    %s18 = scalar_lea.vmem %s0, %s17
    %s19 = sadd.s32 0, 0
  $region5: #{gt_bcedice_loss_new1.1} parent=0 // pred_fallthru
    _
  // Predicated region
  $region6: #{gt_bcedice_loss_new1.1} parent=0 // pred_check
    _
  $region7: #{gt_bcedice_loss_new1.1} parent=0 // pred_check_branch
    %21 = sbr.rel (0) target = $region9
  $region8: #{gt_bcedice_loss_new1.1} parent=0 // pred_region
    %s22 = sadd.s32 0, 0
    %p23 = scmp.lt.s32.totalorder %s22, 0
    %s24 = scalar_select %p23, %s22, 0
    %s25 = smul.addr %s24, 4
    %s26 = scalar_lea.vmem %s1, %s25
    %s27 = sadd.s32 0, 0
  $region9: #{gt_bcedice_loss_new1.1} parent=0 // pred_fallthru
    _
  // Predicated region
  $region10: #{gt_bcedice_loss_new1.1} parent=0 // pred_check
    _
  $region11: #{gt_bcedice_loss_new1.1} parent=0 // pred_check_branch
    %29 = sbr.rel (0) target = $region13
  $region12: #{gt_bcedice_loss_new1.1} parent=0 // pred_region
    %s30 = sadd.s32 0, 0
    %p31 = scmp.lt.s32.totalorder %s30, 0
    %s32 = scalar_select %p31, %s30, 0
    %s33 = smul.addr %s32, 4
    %s34 = scalar_lea.vmem %s2, %s33
    %s35 = sadd.s32 0, 0
  $region13: #{gt_bcedice_loss_new1.1} parent=0 // pred_fallthru
    _
  // Predicated region
  $region14: #{gt_bcedice_loss_new1.1} parent=0 // pred_check
    _
  $region15: #{gt_bcedice_loss_new1.1} parent=0 // pred_check_branch
    %37 = sbr.rel (0) target = $region17
  $region16: #{gt_bcedice_loss_new1.1} parent=0 // pred_region
    %s38 = sadd.s32 0, 0
    %p39 = scmp.lt.s32.totalorder %s38, 0
    %s40 = scalar_select %p39, %s38, 0
    %s41 = smul.addr %s40, 4
    %s42 = scalar_lea.vmem %s3, %s41
    %s43 = sadd.s32 0, 0
  $region17: #{gt_bcedice_loss_new1.1} parent=0 // pred_fallthru
    _
  // Predicated region
  $region18: #{gt_bcedice_loss_new1.1} parent=0 // pred_check
    _
  $region19: #{gt_bcedice_loss_new1.1} parent=0 // pred_check_branch
    %45 = sbr.rel (0) target = $region21
  $region20: #{gt_bcedice_loss_new1.1} parent=0 // pred_region
    %s46 = sadd.s32 0, 0
    %p47 = scmp.lt.s32.totalorder %s46, 0
    %s48 = scalar_select %p47, %s46, 0
    %s49 = smul.addr %s48, 4
    %s50 = scalar_lea.vmem %s4, %s49
    %s51 = sadd.s32 0, 0
  $region21: #{gt_bcedice_loss_new1.1} parent=0 // pred_fallthru
    _
  // Predicated region
  $region22: #{gt_bcedice_loss_new1.1} parent=0 // pred_check
    _
  $region23: #{gt_bcedice_loss_new1.1} parent=0 // pred_check_branch
    %53 = sbr.rel (0) target = $region25
  $region24: #{gt_bcedice_loss_new1.1} parent=0 // pred_region
    %s54 = sadd.s32 0, 0
    %p55 = scmp.lt.s32.totalorder %s54, 0
    %s56 = scalar_select %p55, %s54, 0
    %s57 = smul.addr %s56, 4
    %s58 = scalar_lea.vmem %s5, %s57
    %s59 = sadd.s32 0, 0
  $region25: #{gt_bcedice_loss_new1.1} parent=0 // pred_fallthru
    _
  // Predicated region
  $region26: #{gt_bcedice_loss_new1.1} parent=0 // pred_check
    _
  $region27: #{gt_bcedice_loss_new1.1} parent=0 // pred_check_branch
    %61 = sbr.rel (0) target = $region29
  $region28: #{gt_bcedice_loss_new1.1} parent=0 // pred_region
    %s62 = sadd.s32 0, 0
    %p63 = scmp.lt.s32.totalorder %s62, 0
    %s64 = scalar_select %p63, %s62, 0
    %s65 = smul.addr %s64, 4
    %s66 = scalar_lea.vmem %s6, %s65
    %s67 = sadd.s32 0, 0
  $region29: #{gt_bcedice_loss_new1.1} parent=0 // pred_fallthru
    _
  %s68 = sadd.s32 0, 0
  %p69 = scmp.lt.s32.totalorder %s68, 0
  %s70 = scalar_select %p69, %s68, 0
  %s71 = smul.addr %s70, 4
  %s72 = scalar_lea.vmem %s0, %s71
  %s73 = sadd.s32 0, 0
  %p74 = scmp.lt.s32.totalorder %s73, 0
  %s75 = scalar_select %p74, %s73, 0
  %s76 = smul.addr %s75, 4
  %s77 = scalar_lea.vmem %s1, %s76
  %s78 = sadd.s32 0, 0
  %p79 = scmp.lt.s32.totalorder %s78, 0
  %s80 = scalar_select %p79, %s78, 0
  %s81 = smul.addr %s80, 4
  %s82 = scalar_lea.vmem %s2, %s81
  %s83 = sadd.s32 0, 0
  %p84 = scmp.lt.s32.totalorder %s83, 0
  %s85 = scalar_select %p84, %s83, 0
  %s86 = smul.addr %s85, 4
  %s87 = scalar_lea.vmem %s3, %s86
  %s88 = sadd.s32 0, 0
  %p89 = scmp.lt.s32.totalorder %s88, 0
  %s90 = scalar_select %p89, %s88, 0
  %s91 = smul.addr %s90, 4
  %s92 = scalar_lea.vmem %s4, %s91
  %s93 = sadd.s32 0, 0
  %p94 = scmp.lt.s32.totalorder %s93, 0
  %s95 = scalar_select %p94, %s93, 0
  %s96 = smul.addr %s95, 4
  %s97 = scalar_lea.vmem %s5, %s96
  %s98 = sadd.s32 0, 0
  %p99 = scmp.lt.s32.totalorder %s98, 0
  %s100 = scalar_select %p99, %s98, 0
  %s101 = smul.addr %s100, 4
  %s102 = scalar_lea.vmem %s6, %s101
  %s103 = sadd.s32 0, 0
  %p104 = scmp.lt.s32.totalorder %s103, 0
  %s105 = scalar_select %p104, %s103, 0
  %s106 = smul.addr %s105, 4
  %s107 = scalar_lea.vmem %s0, %s106
  %s108 = sadd.s32 0, 0
  %s109 = sadd.s32 0, 0
  %p110 = scmp.lt.s32.totalorder %s109, 0
  %s111 = scalar_select %p110, %s109, 0
  %s112 = smul.addr %s111, 4
  %s113 = scalar_lea.vmem %s1, %s112
  %s114 = sadd.s32 0, 0
  %s115 = sadd.s32 0, 0
  %p116 = scmp.lt.s32.totalorder %s115, 0
  %s117 = scalar_select %p116, %s115, 0
  %s118 = smul.addr %s117, 4
  %s119 = scalar_lea.vmem %s2, %s118
  %s120 = sadd.s32 0, 0
  %s121 = sadd.s32 0, 0
  %p122 = scmp.lt.s32.totalorder %s121, 0
  %s123 = scalar_select %p122, %s121, 0
  %s124 = smul.addr %s123, 4
  %s125 = scalar_lea.vmem %s3, %s124
  %s126 = sadd.s32 0, 0
  %s127 = sadd.s32 0, 0
  %p128 = scmp.lt.s32.totalorder %s127, 0
  %s129 = scalar_select %p128, %s127, 0
  %s130 = smul.addr %s129, 4
  %s131 = scalar_lea.vmem %s4, %s130
  %s132 = sadd.s32 0, 0
  %s133 = sadd.s32 0, 0
  %p134 = scmp.lt.s32.totalorder %s133, 0
  %s135 = scalar_select %p134, %s133, 0
  %s136 = smul.addr %s135, 4
  %s137 = scalar_lea.vmem %s5, %s136
  %s138 = sadd.s32 0, 0
  %s139 = sadd.s32 0, 0
  %p140 = scmp.lt.s32.totalorder %s139, 0
  %s141 = scalar_select %p140, %s139, 0
  %s142 = smul.addr %s141, 4
  %s143 = scalar_lea.vmem %s6, %s142
  %s144 = sadd.s32 0, 0
  %p145 = scmp.eq.s32.totalorder 0, 0
  // Predicated region
  $region30: #{gt_bcedice_loss_new1.1} parent=0 // pred_check
    %p146 = pneg %p145
  $region31: #{gt_bcedice_loss_new1.1} parent=0 // pred_check_branch
    %148 = sbr.rel (%p146) target = $region33
  $region32: #{gt_bcedice_loss_new1.1} parent=0 // pred_region
    %149 = vst [vmem:[%s7] sm:$0xf] 0.0
    %150 = vst [vmem:[%s7 + $0x4] sm:$0xf] 0.0
    %151 = vst [vmem:[%s7 + $0x8] sm:$0xf] 0.0
    %152 = vst [vmem:[%s7 + $0xc] sm:$0xf] 0.0
    %153 = vst [vmem:[%s7 + $0x10] sm:$0xf] 0.0
    %154 = vst [vmem:[%s7 + $0x14] sm:$0xf] 0.0
    %155 = vst [vmem:[%s7 + $0x18] sm:$0xf] 0.0
    %156 = vst [vmem:[%s7 + $0x1c] sm:$0xf] 0.0
    %157 = vst [vmem:[%s7 + $0x20] sm:$0xf] 0.0
    %158 = vst [vmem:[%s7 + $0x24] sm:$0xf] 0.0
    %159 = vst [vmem:[%s7 + $0x28] sm:$0xf] 0.0
    %160 = vst [vmem:[%s7 + $0x2c] sm:$0xf] 0.0
    %161 = vst [vmem:[%s7 + $0x30] sm:$0xf] 0.0
    %162 = vst [vmem:[%s7 + $0x34] sm:$0xf] 0.0
    %163 = vst [vmem:[%s7 + $0x38] sm:$0xf] 0.0
    %164 = vst [vmem:[%s7 + $0x3c] sm:$0xf] 0.0
    %165 = vst [vmem:[%s7 + $0x40] sm:$0xf] 0.0
    %166 = vst [vmem:[%s7 + $0x44] sm:$0xf] 0.0
    %167 = vst [vmem:[%s7 + $0x48] sm:$0xf] 0.0
  $region33: #{gt_bcedice_loss_new1.1} parent=0 // pred_fallthru
    _
  %v168 = vld [vmem:[%s107] sm:$0xf]
  %s169 = scalar_lea.vmem %s7, 72
  %v170 = vld [vmem:[%s169] sm:$0xf]
  %v171 = vadd.f32 %v170, %v168
  %172 = vst [vmem:[%s169] sm:$0xf] %v171
  %v173 = vld [vmem:[%s113] sm:$0xf]
  %v174 = vmax.f32 %v173, -100.0
  %v175 = vmin.f32 %v174, 100.0
  %v176 = vand.u32 2147483647, %v175
  %v177 = vsub.f32 0.0, %v176
  %v178 = vmul.f32 %v177, 1.442695
  %v179 = vpow.pop %v178
  %v180 = vadd.f32 %v179, 1.0
  %v181 = vrcp.pop %v180
  %v182 = vmul.f32 %v180, %v181
  %v183 = vsub.f32 1.0, %v182
  %v184 = vmul.f32 %v181, %v183
  %v185 = vadd.f32 %v181, %v184
  %vm186 = vweird.f32 %v180
  %vm187 = vweird.f32 %v181
  %vm188 = vmor %vm186, %vm187
  %v189 = vsel %vm188, %v181, %v185
  %v190 = vand.u32 2147483647, %v180
  %vm191 = vcmp.eq.f32.partialorder %v190, 8.507059e+37
  %v192 = vand.u32 %v180, 2147483648
  %v193 = vor.u32 1.1754944e-38, %v192
  %v194 = vsel %vm191, %v193, %v189
  %v195 = vmul.f32 1.0, %v194
  %vm196 = vcmp.ge.f32.partialorder %v175, 0.0
  %v197 = vmul.f32 %v179, %v195
  %v198 = vsel %vm196, %v195, %v197
  %v199 = vlog2.pop %v180
  %v200 = vmul.f32 %v199, 0.6931472
  %v201 = vmax.f32 %v175, 0.0
  %v202 = vmul.f32 %v175, %v168
  %v203 = vsub.f32 %v201, %v202
  %v204 = vadd.f32 %v203, %v200
  %v205 = vld [vmem:[%s7] sm:$0xf]
  %v206 = vadd.f32 %v205, %v204
  %207 = vst [vmem:[%s7] sm:$0xf] %v206
  %s208 = scalar_lea.vmem %s7, 4
  %v209 = vld [vmem:[%s208] sm:$0xf]
  %v210 = vadd.f32 %v209, %v198
  %211 = vst [vmem:[%s208] sm:$0xf] %v210
  %s212 = scalar_lea.vmem %s7, 8
  %v213 = vld [vmem:[%s212] sm:$0xf]
  %v214 = vmul.f32 %v198, %v168
  %v215 = vadd.f32 %v213, %v214
  %216 = vst [vmem:[%s212] sm:$0xf] %v215
  %v217 = vld [vmem:[%s119] sm:$0xf]
  %v218 = vmax.f32 %v217, -100.0
  %v219 = vmin.f32 %v218, 100.0
  %v220 = vand.u32 2147483647, %v219
  %v221 = vsub.f32 0.0, %v220
  %v222 = vmul.f32 %v221, 1.442695
  %v223 = vpow.pop %v222
  %v224 = vadd.f32 %v223, 1.0
  %v225 = vrcp.pop %v224
  %v226 = vmul.f32 %v224, %v225
  %v227 = vsub.f32 1.0, %v226
  %v228 = vmul.f32 %v225, %v227
  %v229 = vadd.f32 %v225, %v228
  %vm230 = vweird.f32 %v224
  %vm231 = vweird.f32 %v225
  %vm232 = vmor %vm230, %vm231
  %v233 = vsel %vm232, %v225, %v229
  %v234 = vand.u32 2147483647, %v224
  %vm235 = vcmp.eq.f32.partialorder %v234, 8.507059e+37
  %v236 = vand.u32 %v224, 2147483648
  %v237 = vor.u32 1.1754944e-38, %v236
  %v238 = vsel %vm235, %v237, %v233
  %v239 = vmul.f32 1.0, %v238
  %vm240 = vcmp.ge.f32.partialorder %v219, 0.0
  %v241 = vmul.f32 %v223, %v239
  %v242 = vsel %vm240, %v239, %v241
  %v243 = vlog2.pop %v224
  %v244 = vmul.f32 %v243, 0.6931472
  %v245 = vmax.f32 %v219, 0.0
  %v246 = vmul.f32 %v219, %v168
  %v247 = vsub.f32 %v245, %v246
  %v248 = vadd.f32 %v247, %v244
  %s249 = scalar_lea.vmem %s7, 12
  %v250 = vld [vmem:[%s249] sm:$0xf]
  %v251 = vadd.f32 %v250, %v248
  %252 = vst [vmem:[%s249] sm:$0xf] %v251
  %s253 = scalar_lea.vmem %s7, 16
  %v254 = vld [vmem:[%s253] sm:$0xf]
  %v255 = vadd.f32 %v254, %v242
  %256 = vst [vmem:[%s253] sm:$0xf] %v255
  %s257 = scalar_lea.vmem %s7, 20
  %v258 = vld [vmem:[%s257] sm:$0xf]
  %v259 = vmul.f32 %v242, %v168
  %v260 = vadd.f32 %v258, %v259
  %261 = vst [vmem:[%s257] sm:$0xf] %v260
  %v262 = vld [vmem:[%s125] sm:$0xf]
  %v263 = vmax.f32 %v262, -100.0
  %v264 = vmin.f32 %v263, 100.0
  %v265 = vand.u32 2147483647, %v264
  %v266 = vsub.f32 0.0, %v265
  %v267 = vmul.f32 %v266, 1.442695
  %v268 = vpow.pop %v267
  %v269 = vadd.f32 %v268, 1.0
  %v270 = vrcp.pop %v269
  %v271 = vmul.f32 %v269, %v270
  %v272 = vsub.f32 1.0, %v271
  %v273 = vmul.f32 %v270, %v272
  %v274 = vadd.f32 %v270, %v273
  %vm275 = vweird.f32 %v269
  %vm276 = vweird.f32 %v270
  %vm277 = vmor %vm275, %vm276
  %v278 = vsel %vm277, %v270, %v274
  %v279 = vand.u32 2147483647, %v269
  %vm280 = vcmp.eq.f32.partialorder %v279, 8.507059e+37
  %v281 = vand.u32 %v269, 2147483648
  %v282 = vor.u32 1.1754944e-38, %v281
  %v283 = vsel %vm280, %v282, %v278
  %v284 = vmul.f32 1.0, %v283
  %vm285 = vcmp.ge.f32.partialorder %v264, 0.0
  %v286 = vmul.f32 %v268, %v284
  %v287 = vsel %vm285, %v284, %v286
  %v288 = vlog2.pop %v269
  %v289 = vmul.f32 %v288, 0.6931472
  %v290 = vmax.f32 %v264, 0.0
  %v291 = vmul.f32 %v264, %v168
  %v292 = vsub.f32 %v290, %v291
  %v293 = vadd.f32 %v292, %v289
  %s294 = scalar_lea.vmem %s7, 24
  %v295 = vld [vmem:[%s294] sm:$0xf]
  %v296 = vadd.f32 %v295, %v293
  %297 = vst [vmem:[%s294] sm:$0xf] %v296
  %s298 = scalar_lea.vmem %s7, 28
  %v299 = vld [vmem:[%s298] sm:$0xf]
  %v300 = vadd.f32 %v299, %v287
  %301 = vst [vmem:[%s298] sm:$0xf] %v300
  %s302 = scalar_lea.vmem %s7, 32
  %v303 = vld [vmem:[%s302] sm:$0xf]
  %v304 = vmul.f32 %v287, %v168
  %v305 = vadd.f32 %v303, %v304
  %306 = vst [vmem:[%s302] sm:$0xf] %v305
  %v307 = vld [vmem:[%s131] sm:$0xf]
  %v308 = vmax.f32 %v307, -100.0
  %v309 = vmin.f32 %v308, 100.0
  %v310 = vand.u32 2147483647, %v309
  %v311 = vsub.f32 0.0, %v310
  %v312 = vmul.f32 %v311, 1.442695
  %v313 = vpow.pop %v312
  %v314 = vadd.f32 %v313, 1.0
  %v315 = vrcp.pop %v314
  %v316 = vmul.f32 %v314, %v315
  %v317 = vsub.f32 1.0, %v316
  %v318 = vmul.f32 %v315, %v317
  %v319 = vadd.f32 %v315, %v318
  %vm320 = vweird.f32 %v314
  %vm321 = vweird.f32 %v315
  %vm322 = vmor %vm320, %vm321
  %v323 = vsel %vm322, %v315, %v319
  %v324 = vand.u32 2147483647, %v314
  %vm325 = vcmp.eq.f32.partialorder %v324, 8.507059e+37
  %v326 = vand.u32 %v314, 2147483648
  %v327 = vor.u32 1.1754944e-38, %v326
  %v328 = vsel %vm325, %v327, %v323
  %v329 = vmul.f32 1.0, %v328
  %vm330 = vcmp.ge.f32.partialorder %v309, 0.0
  %v331 = vmul.f32 %v313, %v329
  %v332 = vsel %vm330, %v329, %v331
  %v333 = vlog2.pop %v314
  %v334 = vmul.f32 %v333, 0.6931472
  %v335 = vmax.f32 %v309, 0.0
  %v336 = vmul.f32 %v309, %v168
  %v337 = vsub.f32 %v335, %v336
  %v338 = vadd.f32 %v337, %v334
  %s339 = scalar_lea.vmem %s7, 36
  %v340 = vld [vmem:[%s339] sm:$0xf]
  %v341 = vadd.f32 %v340, %v338
  %342 = vst [vmem:[%s339] sm:$0xf] %v341
  %s343 = scalar_lea.vmem %s7, 40
  %v344 = vld [vmem:[%s343] sm:$0xf]
  %v345 = vadd.f32 %v344, %v332
  %346 = vst [vmem:[%s343] sm:$0xf] %v345
  %s347 = scalar_lea.vmem %s7, 44
  %v348 = vld [vmem:[%s347] sm:$0xf]
  %v349 = vmul.f32 %v332, %v168
  %v350 = vadd.f32 %v348, %v349
  %351 = vst [vmem:[%s347] sm:$0xf] %v350
  %v352 = vld [vmem:[%s137] sm:$0xf]
  %v353 = vmax.f32 %v352, -100.0
  %v354 = vmin.f32 %v353, 100.0
  %v355 = vand.u32 2147483647, %v354
  %v356 = vsub.f32 0.0, %v355
  %v357 = vmul.f32 %v356, 1.442695
  %v358 = vpow.pop %v357
  %v359 = vadd.f32 %v358, 1.0
  %v360 = vrcp.pop %v359
  %v361 = vmul.f32 %v359, %v360
  %v362 = vsub.f32 1.0, %v361
  %v363 = vmul.f32 %v360, %v362
  %v364 = vadd.f32 %v360, %v363
  %vm365 = vweird.f32 %v359
  %vm366 = vweird.f32 %v360
  %vm367 = vmor %vm365, %vm366
  %v368 = vsel %vm367, %v360, %v364
  %v369 = vand.u32 2147483647, %v359
  %vm370 = vcmp.eq.f32.partialorder %v369, 8.507059e+37
  %v371 = vand.u32 %v359, 2147483648
  %v372 = vor.u32 1.1754944e-38, %v371
  %v373 = vsel %vm370, %v372, %v368
  %v374 = vmul.f32 1.0, %v373
  %vm375 = vcmp.ge.f32.partialorder %v354, 0.0
  %v376 = vmul.f32 %v358, %v374
  %v377 = vsel %vm375, %v374, %v376
  %v378 = vlog2.pop %v359
  %v379 = vmul.f32 %v378, 0.6931472
  %v380 = vmax.f32 %v354, 0.0
  %v381 = vmul.f32 %v354, %v168
  %v382 = vsub.f32 %v380, %v381
  %v383 = vadd.f32 %v382, %v379
  %s384 = scalar_lea.vmem %s7, 48
  %v385 = vld [vmem:[%s384] sm:$0xf]
  %v386 = vadd.f32 %v385, %v383
  %387 = vst [vmem:[%s384] sm:$0xf] %v386
  %s388 = scalar_lea.vmem %s7, 52
  %v389 = vld [vmem:[%s388] sm:$0xf]
  %v390 = vadd.f32 %v389, %v377
  %391 = vst [vmem:[%s388] sm:$0xf] %v390
  %s392 = scalar_lea.vmem %s7, 56
  %v393 = vld [vmem:[%s392] sm:$0xf]
  %v394 = vmul.f32 %v377, %v168
  %v395 = vadd.f32 %v393, %v394
  %396 = vst [vmem:[%s392] sm:$0xf] %v395
  %v397 = vld [vmem:[%s143] sm:$0xf]
  %v398 = vmax.f32 %v397, -100.0
  %v399 = vmin.f32 %v398, 100.0
  %v400 = vand.u32 2147483647, %v399
  %v401 = vsub.f32 0.0, %v400
  %v402 = vmul.f32 %v401, 1.442695
  %v403 = vpow.pop %v402
  %v404 = vadd.f32 %v403, 1.0
  %v405 = vrcp.pop %v404
  %v406 = vmul.f32 %v404, %v405
  %v407 = vsub.f32 1.0, %v406
  %v408 = vmul.f32 %v405, %v407
  %v409 = vadd.f32 %v405, %v408
  %vm410 = vweird.f32 %v404
  %vm411 = vweird.f32 %v405
  %vm412 = vmor %vm410, %vm411
  %v413 = vsel %vm412, %v405, %v409
  %v414 = vand.u32 2147483647, %v404
  %vm415 = vcmp.eq.f32.partialorder %v414, 8.507059e+37
  %v416 = vand.u32 %v404, 2147483648
  %v417 = vor.u32 1.1754944e-38, %v416
  %v418 = vsel %vm415, %v417, %v413
  %v419 = vmul.f32 1.0, %v418
  %vm420 = vcmp.ge.f32.partialorder %v399, 0.0
  %v421 = vmul.f32 %v403, %v419
  %v422 = vsel %vm420, %v419, %v421
  %v423 = vlog2.pop %v404
  %v424 = vmul.f32 %v423, 0.6931472
  %v425 = vmax.f32 %v399, 0.0
  %v426 = vmul.f32 %v399, %v168
  %v427 = vsub.f32 %v425, %v426
  %v428 = vadd.f32 %v427, %v424
  %s429 = scalar_lea.vmem %s7, 60
  %v430 = vld [vmem:[%s429] sm:$0xf]
  %v431 = vadd.f32 %v430, %v428
  %432 = vst [vmem:[%s429] sm:$0xf] %v431
  %s433 = scalar_lea.vmem %s7, 64
  %v434 = vld [vmem:[%s433] sm:$0xf]
  %v435 = vadd.f32 %v434, %v422
  %436 = vst [vmem:[%s433] sm:$0xf] %v435
  %s437 = scalar_lea.vmem %s7, 68
  %v438 = vld [vmem:[%s437] sm:$0xf]
  %v439 = vmul.f32 %v422, %v168
  %v440 = vadd.f32 %v438, %v439
  %441 = vst [vmem:[%s437] sm:$0xf] %v440
  // Predicated region
  $region34: #{gt_bcedice_loss_new1.1} parent=0 // pred_check
    _
  $region35: #{gt_bcedice_loss_new1.1} parent=0 // pred_check_branch
    %443 = sbr.rel (0) target = $region37
  $region36: #{gt_bcedice_loss_new1.1} parent=0 // pred_region
    _
  $region37: #{gt_bcedice_loss_new1.1} parent=0 // pred_fallthru
    _
  // Predicated region
  $region38: #{gt_bcedice_loss_new1.1} parent=0 // pred_check
    _
  $region39: #{gt_bcedice_loss_new1.1} parent=0 // pred_check_branch
    %445 = sbr.rel (0) target = $region41
  $region40: #{gt_bcedice_loss_new1.1} parent=0 // pred_region
    _
  $region41: #{gt_bcedice_loss_new1.1} parent=0 // pred_fallthru
    _

</llo_original>
